<compile_context>
chip_gen: v7x
topology: tpu7x:2x2x1
jax: 0.10.0
libtpu: 0.0.40
codegen_flags: <defaults>
</compile_context>

<pallas_src>
import functools
import math

import jax
import jax.numpy as jnp
from jax.experimental import pallas as pl
from jax.experimental.pallas import tpu as pltpu


def _layer_norm_f32(z, gamma, beta, eps):
    """LayerNorm over the last dim; z/gamma/beta already f32."""
    d_inv = jnp.float32(1.0 / z.shape[-1])
    # One-pass statistics: var = E[z^2] - mean^2 (both reductions independent).
    mean = jnp.sum(z, axis=-1, keepdims=True) * d_inv
    ex2 = jnp.sum(z * z, axis=-1, keepdims=True) * d_inv
    var = jnp.maximum(ex2 - mean * mean, jnp.float32(0.0))
    inv = jax.lax.rsqrt(var + jnp.float32(eps))
    return (z - mean) * inv * gamma + beta


def addnorm_eval_kernel(x_ref, y_ref, gamma_ref, beta_ref, o_ref, *, eps):
    """Eval mode: dropout is identity -> LayerNorm(X + Y)."""
    z = x_ref[...].astype(jnp.float32) + y_ref[...].astype(jnp.float32)
    o = _layer_norm_f32(z, gamma_ref[...], beta_ref[...], eps)
    o_ref[...] = o.astype(o_ref.dtype)


def addnorm_train_kernel(x_ref, y_ref, gamma_ref, beta_ref, bits_ref, o_ref, *,
                         eps, keep_threshold, inv_keep):
    """Training mode: inverted dropout on Y, then residual add + LayerNorm."""
    y = y_ref[...].astype(jnp.float32)
    # Integer-threshold dropout: keep iff bits < (1-p) * 2^32.
    keep = bits_ref[...] < jnp.uint32(keep_threshold)
    y = jnp.where(keep, y * jnp.float32(inv_keep), jnp.float32(0.0))
    z = x_ref[...].astype(jnp.float32) + y
    o = _layer_norm_f32(z, gamma_ref[...], beta_ref[...], eps)
    o_ref[...] = o.astype(o_ref.dtype)


def _dropout_bits(seed, shape):
    """Host-side uniform uint32 bits for the dropout mask.

    TODO(synk): an in-kernel pltpu.prng_random_bits path would avoid this
    extra HBM stream, but it has no CPU/interpret lowering; host-side bits
    keep the kernel portable and make training-mode outputs reproducible.
    Callers should fold a step counter into `seed` so masks differ per step.
    """
    key = jax.random.PRNGKey(seed)
    return jax.random.bits(key, shape, dtype=jnp.uint32)


def _select_row_tile(N, D, dtype, training):
    """VMEM-budgeted row tile, per TPU generation (v5e/v6e 128 MiB, v7x 64 MiB)."""
    try:
        vmem_cap = int(pltpu.get_tpu_info().vmem_capacity_bytes)
    except Exception:
        vmem_cap = 64 * 1024 * 1024          # conservative (v7x-sized) fallback
    # Raise the scoped limit (v5e default is only 16 MiB of 128 MiB physical).
    vmem_limit = min(int(vmem_cap * 0.75), 100 * 1024 * 1024)

    item = jnp.dtype(dtype).itemsize
    # Per tile row: double-buffered X, Y, O streams (+ u32 bits when training)
    # plus ~3 f32 intermediates the body materializes.
    per_row = D * (2 * 3 * item + (2 * 4 if training else 0) + 3 * 4)
    budget = int(vmem_limit * 0.6)
    tm = budget // max(per_row, 1)
    tm = (tm // 8) * 8
    tm = max(8, min(tm, 1024))
    if N <= tm:
        return N, vmem_limit
    return tm, vmem_limit


def add_norm(X, Y, gamma, beta, *, dropout_rate=0.0, eps=1e-5,
             training=False, seed=0):
    """AddNorm forward: LayerNorm(dropout(Y) + X) over the last dim of X/Y."""
    assert X.shape == Y.shape
    orig_shape = X.shape
    D = orig_shape[-1]
    N = int(math.prod(orig_shape[:-1]))

    x2 = X.reshape(N, D)
    y2 = Y.reshape(N, D)
    # Pre-cast gamma/beta to f32: they stay resident in VMEM (constant index_map).
    g2 = gamma.reshape(1, D).astype(jnp.float32)
    b2 = beta.reshape(1, D).astype(jnp.float32)

    apply_dropout = bool(training) and float(dropout_rate) > 0.0
    Tm, vmem_limit = _select_row_tile(N, D, X.dtype, apply_dropout)
    grid = (pl.cdiv(N, Tm),)

    row_spec = pl.BlockSpec((Tm, D), lambda i: (i, 0))
    vec_spec = pl.BlockSpec((1, D), lambda i: (0, 0))
    compiler_params = pltpu.CompilerParams(
        dimension_semantics=("parallel",),     # rows are independent
        vmem_limit_bytes=vmem_limit,
    )
    out_shape = jax.ShapeDtypeStruct((N, D), X.dtype)

    if apply_dropout:
        keep_prob = 1.0 - float(dropout_rate)
        keep_threshold = min(int(round(keep_prob * 2.0 ** 32)), 2 ** 32 - 1)
        kernel = functools.partial(
            addnorm_train_kernel, eps=float(eps),
            keep_threshold=keep_threshold, inv_keep=1.0 / keep_prob)
        bits = _dropout_bits(seed, (N, D))
        out = pl.pallas_call(
            kernel,
            out_shape=out_shape,
            grid=grid,
            in_specs=[row_spec, row_spec, vec_spec, vec_spec, row_spec],
            out_specs=row_spec,
            compiler_params=compiler_params,
        )(x2, y2, g2, b2, bits)
    else:
        kernel = functools.partial(addnorm_eval_kernel, eps=float(eps))
        out = pl.pallas_call(
            kernel,
            out_shape=out_shape,
            grid=grid,
            in_specs=[row_spec, row_spec, vec_spec, vec_spec],
            out_specs=row_spec,
            compiler_params=compiler_params,
        )(x2, y2, g2, b2)
    return out.reshape(orig_shape)


def add_norm_ref(X, Y, gamma, beta, eps=1e-5):
    """Pure-JAX reference: LayerNorm(X + Y) over the last dim."""
    z = (X + Y).astype(jnp.float32)
    mean = jnp.mean(z, axis=-1, keepdims=True)
    var = jnp.mean((z - mean) ** 2, axis=-1, keepdims=True)
    return ((z - mean) * jax.lax.rsqrt(var + eps) * gamma + beta).astype(X.dtype)


if __name__ == "__main__":
    # Shapes consistent with AddNorm usage in a transformer block:
    # (batch, seq, d_model) with LayerNorm over d_model.
    batch, seq, d_model = 2, 8, 32
    dropout = 0.5

    key = jax.random.PRNGKey(0)
    kx, ky, kg, kb = jax.random.split(key, 4)
    X = jax.random.normal(kx, (batch, seq, d_model), jnp.float32)
    Y = jax.random.normal(ky, (batch, seq, d_model), jnp.float32)
    gamma = 1.0 + 0.1 * jax.random.normal(kg, (d_model,), jnp.float32)
    beta = 0.1 * jax.random.normal(kb, (d_model,), jnp.float32)

    # Eval mode (dropout is identity) -> exact check against the reference.
    out_eval = add_norm(X, Y, gamma, beta, dropout_rate=dropout,
                        training=False)
    out_eval = jax.block_until_ready(out_eval)
    ref_eval = add_norm_ref(X, Y, gamma, beta)
    assert out_eval.shape == (batch, seq, d_model)
    assert jnp.allclose(out_eval, ref_eval, atol=1e-5, rtol=1e-5), \
        "eval-mode output mismatch vs reference"

    # Training mode: same uint32 bit stream is reproducible on the host, so
    # the fused dropout + add + LayerNorm can be checked exactly.
    train_seed = 123
    out_train = add_norm(X, Y, gamma, beta, dropout_rate=dropout,
                         training=True, seed=train_seed)
    out_train = jax.block_until_ready(out_train)
    assert out_train.shape == (batch, seq, d_model)

    bits = _dropout_bits(train_seed, (batch * seq, d_model)).reshape(
        batch, seq, d_model)
    thr = jnp.uint32(min(int(round((1.0 - dropout) * 2.0 ** 32)), 2 ** 32 - 1))
    y_drop = jnp.where(bits < thr, Y / (1.0 - dropout), 0.0)
    ref_train = add_norm_ref(X, y_drop, gamma, beta)
    assert bool(jnp.all(jnp.isfinite(out_train)))
    assert jnp.allclose(out_train, ref_train, atol=1e-5, rtol=1e-5), \
        "training-mode output mismatch vs reference"

    print("KERNEL_OK")
</pallas_src>

<mosaic_0001>
module attributes {stable_mosaic.version = 11 : i64} {
  func.func @addnorm_eval_kernel(%arg0: i32, %arg1: memref<16x32xf32, #tpu.memory_space<vmem>>, %arg2: memref<16x32xf32, #tpu.memory_space<vmem>>, %arg3: memref<1x32xf32, #tpu.memory_space<vmem>>, %arg4: memref<1x32xf32, #tpu.memory_space<vmem>>, %arg5: memref<16x32xf32, #tpu.memory_space<vmem>>) attributes {dimension_semantics = [#tpu.dimension_semantics<parallel>], iteration_bounds = array<i64: 1>, scalar_prefetch = 0 : i64, scratch_operands = 0 : i64, tpu.core_type = #tpu.core_type<tc>, window_params = [{transform_indices = @transform_0, window_bounds = array<i64: 16, 32>}, {transform_indices = @transform_1, window_bounds = array<i64: 16, 32>}, {pipeline_mode = #tpu.pipeline_mode<synchronous>, transform_indices = @transform_2, window_bounds = array<i64: 1, 32>}, {pipeline_mode = #tpu.pipeline_mode<synchronous>, transform_indices = @transform_3, window_bounds = array<i64: 1, 32>}, {transform_indices = @transform_4, window_bounds = array<i64: 16, 32>}]} {
    %c0 = arith.constant 0 : index
    %c0_0 = arith.constant 0 : index
    %0 = vector.load %arg1[%c0, %c0_0] : memref<16x32xf32, #tpu.memory_space<vmem>>, vector<16x32xf32>
    %c0_1 = arith.constant 0 : index
    %c0_2 = arith.constant 0 : index
    %1 = vector.load %arg2[%c0_1, %c0_2] : memref<16x32xf32, #tpu.memory_space<vmem>>, vector<16x32xf32>
    %2 = arith.addf %0, %1 : vector<16x32xf32>
    %c0_3 = arith.constant 0 : index
    %c0_4 = arith.constant 0 : index
    %3 = vector.load %arg3[%c0_3, %c0_4] : memref<1x32xf32, #tpu.memory_space<vmem>>, vector<1x32xf32>
    %c0_5 = arith.constant 0 : index
    %c0_6 = arith.constant 0 : index
    %4 = vector.load %arg4[%c0_5, %c0_6] : memref<1x32xf32, #tpu.memory_space<vmem>>, vector<1x32xf32>
    %cst = arith.constant dense<0.000000e+00> : vector<16xf32>
    %5 = vector.multi_reduction <add>, %2, %cst [1] : vector<16x32xf32> to vector<16xf32>
    %6 = vector.shape_cast %5 : vector<16xf32> to vector<16x1xf32>
    %cst_7 = arith.constant 3.125000e-02 : f32
    %7 = vector.broadcast %cst_7 : f32 to vector<16x1xf32>
    %8 = arith.mulf %6, %7 : vector<16x1xf32>
    %9 = arith.mulf %2, %2 : vector<16x32xf32>
    %cst_8 = arith.constant dense<0.000000e+00> : vector<16xf32>
    %10 = vector.multi_reduction <add>, %9, %cst_8 [1] : vector<16x32xf32> to vector<16xf32>
    %11 = vector.shape_cast %10 : vector<16xf32> to vector<16x1xf32>
    %cst_9 = arith.constant 3.125000e-02 : f32
    %12 = vector.broadcast %cst_9 : f32 to vector<16x1xf32>
    %13 = arith.mulf %11, %12 : vector<16x1xf32>
    %14 = arith.mulf %8, %8 : vector<16x1xf32>
    %15 = arith.subf %13, %14 : vector<16x1xf32>
    %cst_10 = arith.constant 0.000000e+00 : f32
    %16 = vector.broadcast %cst_10 : f32 to vector<16x1xf32>
    %17 = arith.maximumf %15, %16 : vector<16x1xf32>
    %cst_11 = arith.constant 9.99999974E-6 : f32
    %18 = vector.broadcast %cst_11 : f32 to vector<16x1xf32>
    %19 = arith.addf %17, %18 : vector<16x1xf32>
    %20 = math.rsqrt %19 : vector<16x1xf32>
    %21 = vector.broadcast %8 : vector<16x1xf32> to vector<16x32xf32>
    %22 = arith.subf %2, %21 : vector<16x32xf32>
    %23 = vector.broadcast %20 : vector<16x1xf32> to vector<16x32xf32>
    %24 = arith.mulf %22, %23 : vector<16x32xf32>
    %25 = vector.broadcast %3 : vector<1x32xf32> to vector<16x32xf32>
    %26 = arith.mulf %24, %25 : vector<16x32xf32>
    %27 = vector.broadcast %4 : vector<1x32xf32> to vector<16x32xf32>
    %28 = arith.addf %26, %27 : vector<16x32xf32>
    %c0_12 = arith.constant 0 : index
    %c0_13 = arith.constant 0 : index
    %29 = vector.load %arg5[%c0_12, %c0_13] : memref<16x32xf32, #tpu.memory_space<vmem>>, vector<16x32xf32>
    tpu.vector_store %arg5[%c0_12, %c0_13], %28 {strides = array<i32>} : memref<16x32xf32, #tpu.memory_space<vmem>>, vector<16x32xf32>,
    return
  }
  func.func @transform_0(%arg0: i32) -> (i32, i32) {
    %c0_i32 = arith.constant 0 : i32
    %c0_i32_0 = arith.constant 0 : i32
    return %arg0, %c0_i32 : i32, i32
  }
  func.func @transform_1(%arg0: i32) -> (i32, i32) {
    %c0_i32 = arith.constant 0 : i32
    %c0_i32_0 = arith.constant 0 : i32
    return %arg0, %c0_i32 : i32, i32
  }
  func.func @transform_2(%arg0: i32) -> (i32, i32) {
    %c0_i32 = arith.constant 0 : i32
    %c0_i32_0 = arith.constant 0 : i32
    %c0_i32_1 = arith.constant 0 : i32
    return %c0_i32, %c0_i32_0 : i32, i32
  }
  func.func @transform_3(%arg0: i32) -> (i32, i32) {
    %c0_i32 = arith.constant 0 : i32
    %c0_i32_0 = arith.constant 0 : i32
    %c0_i32_1 = arith.constant 0 : i32
    return %c0_i32, %c0_i32_0 : i32, i32
  }
  func.func @transform_4(%arg0: i32) -> (i32, i32) {
    %c0_i32 = arith.constant 0 : i32
    %c0_i32_0 = arith.constant 0 : i32
    return %arg0, %c0_i32 : i32, i32
  }
}

</mosaic_0001>

<llo_original>
// kernel: tpu_custom_call.1
$region0: #{tpu_custom_call.1}
  #allocation0 [shape = 'u32[]', space=smem, size = 0x4, offset = 0x4, fixed_abs, tag = 'smem constant byte address 0x4 - core index']
  #allocation1 [shape = 'u32[144,128]{1,0:T(1,128)}', space=vmem, size = 0x12000, scoped, tag = 'internal scratch']
  %s0 = inlined_call_operand.hbm [shape: f32[16,32], index: 0, kind: input, shape index: {}]
  %s1 = inlined_call_operand.hbm [shape: f32[16,32], index: 1, kind: input, shape index: {}]
  %s2 = inlined_call_operand.vmem [shape: f32[1,32], index: 2, kind: input, shape index: {}]
  %s3 = inlined_call_operand.vmem [shape: f32[1,32], index: 3, kind: input, shape index: {}]
  %s4 = inlined_call_operand.hbm [shape: f32[16,32], index: 4, kind: output, shape index: {}]
  %s5 = sld [smem:[#allocation0]]
  $region34: #{tpu_custom_call.1} parent=0
    _
  %s7 = ssub.s32 1, %s5
  %s8 = scalar_select 0, %s7, %s5
  $region1: #{tpu_custom_call.1} parent=0
    #allocation2 [shape = 'u8[8192]{0}', space=vmem, size = 0x2000, scoped, tag = 'input window, operand 0, single buffered']
    #allocation3 [shape = 's32[1]{0}', space=sflag, size = 0x4, scoped, tag = 'scoped memory for tpu_custom_call.1']
    #allocation4 [shape = 's32[1]{0}', space=sflag, size = 0x4, scoped, tag = 'scoped memory for tpu_custom_call.1']
    #allocation5 [shape = 'u8[8192]{0}', space=vmem, size = 0x2000, scoped, tag = 'input window, operand 1, single buffered']
    #allocation6 [shape = 's32[1]{0}', space=sflag, size = 0x4, scoped, tag = 'scoped memory for tpu_custom_call.1']
    #allocation7 [shape = 'u8[8192]{0}', space=vmem, size = 0x2000, scoped, tag = 'output window, operand 0, single buffered']
    %9 = vsyncpa [#allocation3], 0
    %10 = vsyncpa [#allocation6], 0
    %11 = vsyncpa [#allocation4], 0
    // Predicated region
    $region2: #{tpu_custom_call.1} parent=1 // pred_check
      _
    $region3: #{tpu_custom_call.1} parent=1 // pred_check_branch
      %13 = sbr.rel (0) target = $region5
    $region4: #{tpu_custom_call.1} parent=1 // pred_region
      %s15 = ssub.s32 256, 256
      %16 = vsyncadd [#allocation3], %s15
      %s17 = sshll.u32 [#allocation2], 4
      %s18 = int_to_ptr.vmem [resolvable:$true] %s17
      %23 = dma.hbm_to_vmem [thread:$0]  %s0, 256, %s18, [#allocation3], 128, 128, 8
    $region5: #{tpu_custom_call.1} parent=1 // pred_fallthru
      _
    // Predicated region
    $region6: #{tpu_custom_call.1} parent=1 // pred_check
      _
    $region7: #{tpu_custom_call.1} parent=1 // pred_check_branch
      %25 = sbr.rel (0) target = $region9
    $region8: #{tpu_custom_call.1} parent=1 // pred_region
      %s27 = ssub.s32 256, 256
      %28 = vsyncadd [#allocation6], %s27
      %s29 = sshll.u32 [#allocation5], 4
      %s30 = int_to_ptr.vmem [resolvable:$true] %s29
      %35 = dma.hbm_to_vmem [thread:$0]  %s1, 256, %s30, [#allocation6], 128, 128, 8
    $region9: #{tpu_custom_call.1} parent=1 // pred_fallthru
      _
    // Predicated region
    $region10: #{tpu_custom_call.1} parent=1 // pred_check
      _
    $region11: #{tpu_custom_call.1} parent=1 // pred_check_branch
      %37 = sbr.rel (0) target = $region13
    $region12: #{tpu_custom_call.1} parent=1 // pred_region
      _
    $region13: #{tpu_custom_call.1} parent=1 // pred_fallthru
      _
    // Predicated region
    $region14: #{tpu_custom_call.1} parent=1 // pred_check
      _
    $region15: #{tpu_custom_call.1} parent=1 // pred_check_branch
      %39 = sbr.rel (0) target = $region17
    $region16: #{tpu_custom_call.1} parent=1 // pred_region
      _
    $region17: #{tpu_custom_call.1} parent=1 // pred_fallthru
      _
    // Predicated region
    $region18: #{tpu_custom_call.1} parent=1 // pred_check
      _
    $region19: #{tpu_custom_call.1} parent=1 // pred_check_branch
      %41 = sbr.rel (0) target = $region21
    $region20: #{tpu_custom_call.1} parent=1 // pred_region
      %42 = dma.done [#allocation3], 256
    $region21: #{tpu_custom_call.1} parent=1 // pred_fallthru
      _
    // Predicated region
    $region22: #{tpu_custom_call.1} parent=1 // pred_check
      _
    $region23: #{tpu_custom_call.1} parent=1 // pred_check_branch
      %44 = sbr.rel (0) target = $region25
    $region24: #{tpu_custom_call.1} parent=1 // pred_region
      %45 = dma.done [#allocation6], 256
    $region25: #{tpu_custom_call.1} parent=1 // pred_fallthru
      _
    %v46 = vld [vmem:[#allocation2] sm:$0xff]
    %v47 = vld [vmem:[#allocation2 + $0x8] sm:$0xff]
    %v48 = vld [vmem:[#allocation5] sm:$0xff]
    %v49 = vld [vmem:[#allocation5 + $0x8] sm:$0xff]
    %v50 = vadd.f32 %v46, %v48
    %v51 = vadd.f32 %v47, %v49
    %v52 = vld [vmem:[%s2] sm:$0x1]
    %v53 = vld [vmem:[%s3] sm:$0x1]
    %vm54 = vcmask 261120
    %v55 = vsel %vm54, %v50, 0.0
    %56 = vadd.xlane.f32.xlu0 %v55
    %v57 = vpop.xlane.xlu0 %56
    %v58 = vsel %vm54, %v51, 0.0
    %59 = vadd.xlane.f32.xlu0 %v58
    %v60 = vpop.xlane.xlu0 %59
    %v61 = vmul.f32 %v57, 0.03125
    %v62 = vmul.f32 %v60, 0.03125
    %v63 = vmul.f32 %v50, %v50
    %v64 = vmul.f32 %v51, %v51
    %v65 = vsel %vm54, %v63, 0.0
    %66 = vadd.xlane.f32.xlu0 %v65
    %v67 = vpop.xlane.xlu0 %66
    %v68 = vsel %vm54, %v64, 0.0
    %69 = vadd.xlane.f32.xlu0 %v68
    %v70 = vpop.xlane.xlu0 %69
    %v71 = vmul.f32 %v67, 0.03125
    %v72 = vmul.f32 %v70, 0.03125
    %v73 = vmul.f32 %v61, %v61
    %v74 = vmul.f32 %v62, %v62
    %v75 = vsub.f32 %v71, %v73
    %v76 = vsub.f32 %v72, %v74
    %v77 = vmax.f32 %v75, 0.0
    %v78 = vmax.f32 %v76, 0.0
    %v79 = vadd.f32 %v77, 1e-05
    %v80 = vadd.f32 %v78, 1e-05
    %v81 = vrsqrt.pop %v79
    %v82 = vrsqrt.pop %v80
    %v83 = vsub.f32 %v50, %v61
    %v84 = vsub.f32 %v51, %v62
    %v85 = vmul.f32 %v83, %v81
    %v86 = vmul.f32 %v84, %v82
    %v88 = vlaneseq
    %v89 = vshrl.u32 %v88, 7
    %v90 = vsub.s32 0, %v89
    %v91 = vrot.slane %v52, %v90
    %v93 = vmul.f32 %v85, %v91
    %v94 = vmul.f32 %v86, %v91
    %v96 = vlaneseq
    %v97 = vshrl.u32 %v96, 7
    %v98 = vsub.s32 0, %v97
    %v99 = vrot.slane %v53, %v98
    %v101 = vadd.f32 %v93, %v99
    %v102 = vadd.f32 %v94, %v99
    %103 = vst.msk [vmem:[#allocation7] sm:$0xff] %vm54, %v101
    %104 = vst.msk [vmem:[#allocation7 + $0x8] sm:$0xff] %vm54, %v102
    // Predicated region
    $region26: #{tpu_custom_call.1} parent=1 // pred_check
      _
    $region27: #{tpu_custom_call.1} parent=1 // pred_check_branch
      %106 = sbr.rel (0) target = $region29
    $region28: #{tpu_custom_call.1} parent=1 // pred_region
      %s108 = ssub.s32 256, 256
      %109 = vsyncadd [#allocation4], %s108
      %s110 = sshll.u32 [#allocation7], 4
      %s111 = int_to_ptr.vmem [resolvable:$true] %s110
      %116 = dma.vmem_to_hbm [thread:$0]  %s111, 256, %s4, [#allocation4], 128, 128, 8
    $region29: #{tpu_custom_call.1} parent=1 // pred_fallthru
      _
    // Predicated region
    $region30: #{tpu_custom_call.1} parent=1 // pred_check
      _
    $region31: #{tpu_custom_call.1} parent=1 // pred_check_branch
      %118 = sbr.rel (0) target = $region33
    $region32: #{tpu_custom_call.1} parent=1 // pred_region
      %119 = dma.done [#allocation4], 256
    $region33: #{tpu_custom_call.1} parent=1 // pred_fallthru
      _
    %120 = vsyncpa [#allocation3], 1
    %121 = vsyncpa [#allocation6], 1
    %122 = vsyncpa [#allocation4], 1

</llo_original>
